<compile_context>
chip_gen: v5e
topology: v5e:2x2
jax: 0.10.0
libtpu: 0.0.40
codegen_flags: <defaults>
</compile_context>

<pallas_src>
import jax
import jax.numpy as jnp
from jax.experimental import pallas as pl
from jax.experimental.pallas import tpu as pltpu


# ----------------------------------------------------------------------------
# Fused SE kernel: one batch tile per grid step.
# ----------------------------------------------------------------------------
def se_kernel(x_ref, w1_ref, w2_ref, out_ref):
    # x_ref:   (TB, C, L)   batch tile of the input
    # w1_ref:  (C, Cr)      fc1 weight, pre-transposed (PyTorch W1 is (Cr, C))
    # w2_ref:  (Cr, C)      fc2 weight, pre-transposed (PyTorch W2 is (C, Cr))
    # out_ref: (TB, C, L)
    x = x_ref[...]                                                   # (TB, C, L)

    # Squeeze: AdaptiveAvgPool1d(1) == mean over the length axis (XLU reduce).
    y = jnp.mean(x, axis=-1)                                         # (TB, C)

    # Excitation: Linear -> ReLU -> Linear -> Sigmoid (no biases), f32 accumulate.
    h = jnp.dot(y, w1_ref[...], preferred_element_type=jnp.float32)  # (TB, Cr)
    h = jnp.maximum(h, 0.0)
    s = jnp.dot(h, w2_ref[...], preferred_element_type=jnp.float32)  # (TB, C)
    s = jax.nn.sigmoid(s)                                            # EUP

    # Scale: broadcast the per-channel gate along the length (lane) axis.
    out_ref[...] = x * s[:, :, None]


# ----------------------------------------------------------------------------
# Wrapper
# ----------------------------------------------------------------------------
def se_layer_forward(x, w1_t, w2_t, *, tile_b=8):
    """x: [B, C, L] f32, w1_t: [C, C//r] f32, w2_t: [C//r, C] f32 -> [B, C, L]."""
    B, C, L = x.shape
    Cr = w1_t.shape[1]
    assert w1_t.shape == (C, Cr) and w2_t.shape == (Cr, C)

    # Batch tile: multiple of the 8-row sublane granularity when possible.
    tb = min(tile_b, B)
    nb = pl.cdiv(B, tb)
    B_pad = nb * tb
    if B_pad != B:
        # Padded rows are zeros -> pooled y = 0, harmless; sliced off below.
        x = jnp.pad(x, ((0, B_pad - B), (0, 0), (0, 0)))

    # VMEM budget: double-buffered input + output tiles, plus resident weights.
    tile_bytes = tb * C * L * 4
    w_bytes = (C * Cr + Cr * C) * 4
    vmem_limit = min(max(4 * tile_bytes + 4 * w_bytes + (1 << 20), 4 << 20), 96 << 20)

    cost = pl.CostEstimate(
        flops=2 * B_pad * 2 * C * Cr + 3 * B_pad * C * L,
        transcendentals=B_pad * C,
        bytes_accessed=2 * B_pad * C * L * 4 + w_bytes,
    )

    out = pl.pallas_call(
        se_kernel,
        out_shape=jax.ShapeDtypeStruct((B_pad, C, L), jnp.float32),
        grid=(nb,),
        in_specs=[
            pl.BlockSpec((tb, C, L), lambda i: (i, 0, 0)),   # stream x over batch
            pl.BlockSpec((C, Cr), lambda i: (0, 0)),         # fc1 weight, resident
            pl.BlockSpec((Cr, C), lambda i: (0, 0)),         # fc2 weight, resident
        ],
        out_specs=pl.BlockSpec((tb, C, L), lambda i: (i, 0, 0)),
        compiler_params=pltpu.CompilerParams(
            dimension_semantics=("parallel",),               # shard batch across TCs
            vmem_limit_bytes=vmem_limit,
        ),
        cost_estimate=cost,
    )(x, w1_t, w2_t)

    return out[:B]


if __name__ == "__main__":
    # Small shapes consistent with SELayer(channel=C, reduction=16) on [B, C, L].
    B, C, L = 2, 64, 16
    reduction = 16
    Cr = C // reduction

    key = jax.random.PRNGKey(0)
    kx, k1, k2 = jax.random.split(key, 3)
    x = jax.random.normal(kx, (B, C, L), dtype=jnp.float32)
    # Pre-transposed Linear weights ([in, out]); nn.Linear(bias=False) semantics.
    w1_t = (0.1 * jax.random.normal(k1, (C, Cr))).astype(jnp.float32)
    w2_t = (0.1 * jax.random.normal(k2, (Cr, C))).astype(jnp.float32)

    out = se_layer_forward(x, w1_t, w2_t)
    jax.block_until_ready(out)
    assert out.shape == (B, C, L)

    # Pure-JAX reference check (same math as the PyTorch module in eval mode).
    y_ref = x.mean(axis=-1)
    s_ref = jax.nn.sigmoid(jnp.maximum(y_ref @ w1_t, 0.0) @ w2_t)
    ref = x * s_ref[:, :, None]
    assert jnp.allclose(out, ref, atol=1e-5, rtol=1e-5)

    print("KERNEL_OK")
</pallas_src>

<mosaic_0001>
module attributes {stable_mosaic.version = 11 : i64} {
  func.func @se_kernel(%arg0: i32, %arg1: memref<2x64x16xf32, #tpu.memory_space<vmem>>, %arg2: memref<64x4xf32, #tpu.memory_space<vmem>>, %arg3: memref<4x64xf32, #tpu.memory_space<vmem>>, %arg4: memref<2x64x16xf32, #tpu.memory_space<vmem>>) attributes {dimension_semantics = [#tpu.dimension_semantics<parallel>], iteration_bounds = array<i64: 1>, scalar_prefetch = 0 : i64, scratch_operands = 0 : i64, tpu.core_type = #tpu.core_type<tc>, window_params = [{transform_indices = @transform_0, window_bounds = array<i64: 2, 64, 16>}, {pipeline_mode = #tpu.pipeline_mode<synchronous>, transform_indices = @transform_1, window_bounds = array<i64: 64, 4>}, {pipeline_mode = #tpu.pipeline_mode<synchronous>, transform_indices = @transform_2, window_bounds = array<i64: 4, 64>}, {transform_indices = @transform_3, window_bounds = array<i64: 2, 64, 16>}]} {
    %c0 = arith.constant 0 : index
    %c0_0 = arith.constant 0 : index
    %c0_1 = arith.constant 0 : index
    %0 = vector.load %arg1[%c0, %c0_0, %c0_1] : memref<2x64x16xf32, #tpu.memory_space<vmem>>, vector<2x64x16xf32>
    %cst = arith.constant dense<0.000000e+00> : vector<2x64xf32>
    %1 = vector.multi_reduction <add>, %0, %cst [2] : vector<2x64x16xf32> to vector<2x64xf32>
    %cst_2 = arith.constant 1.600000e+01 : f32
    %2 = vector.broadcast %cst_2 : f32 to vector<2x64xf32>
    %3 = arith.divf %1, %2 : vector<2x64xf32>
    %c0_3 = arith.constant 0 : index
    %c0_4 = arith.constant 0 : index
    %4 = vector.load %arg2[%c0_3, %c0_4] : memref<64x4xf32, #tpu.memory_space<vmem>>, vector<64x4xf32>
    %cst_5 = arith.constant dense<0.000000e+00> : vector<2x4xf32>
    %5 = tpu.matmul %3, %4, %cst_5 {dimension_numbers = #tpu.dot_dimension_numbers<[1], [0], [0], [1], [0, 0, 1, 1], [], []>} : vector<2x64xf32>, vector<64x4xf32>, vector<2x4xf32> -> vector<2x4xf32>
    %cst_6 = arith.constant 0.000000e+00 : f32
    %6 = vector.broadcast %cst_6 : f32 to vector<2x4xf32>
    %7 = arith.maximumf %5, %6 : vector<2x4xf32>
    %c0_7 = arith.constant 0 : index
    %c0_8 = arith.constant 0 : index
    %8 = vector.load %arg3[%c0_7, %c0_8] : memref<4x64xf32, #tpu.memory_space<vmem>>, vector<4x64xf32>
    %cst_9 = arith.constant dense<0.000000e+00> : vector<2x64xf32>
    %9 = tpu.matmul %7, %8, %cst_9 {dimension_numbers = #tpu.dot_dimension_numbers<[1], [0], [0], [1], [0, 0, 1, 1], [], []>} : vector<2x4xf32>, vector<4x64xf32>, vector<2x64xf32> -> vector<2x64xf32>
    %10 = arith.negf %9 : vector<2x64xf32>
    %11 = math.exp %10 : vector<2x64xf32>
    %cst_10 = arith.constant 1.000000e+00 : f32
    %12 = vector.broadcast %cst_10 : f32 to vector<2x64xf32>
    %13 = arith.addf %12, %11 : vector<2x64xf32>
    %14 = arith.divf %12, %13 : vector<2x64xf32>
    %15 = vector.shape_cast %14 : vector<2x64xf32> to vector<2x64x1xf32>
    %16 = vector.broadcast %15 : vector<2x64x1xf32> to vector<2x64x16xf32>
    %17 = arith.mulf %0, %16 : vector<2x64x16xf32>
    %c0_11 = arith.constant 0 : index
    %c0_12 = arith.constant 0 : index
    %c0_13 = arith.constant 0 : index
    %18 = vector.load %arg4[%c0_11, %c0_12, %c0_13] : memref<2x64x16xf32, #tpu.memory_space<vmem>>, vector<2x64x16xf32>
    tpu.vector_store %arg4[%c0_11, %c0_12, %c0_13], %17 {strides = array<i32>} : memref<2x64x16xf32, #tpu.memory_space<vmem>>, vector<2x64x16xf32>,
    return
  }
  func.func @transform_0(%arg0: i32) -> (i32, i32, i32) {
    %c0_i32 = arith.constant 0 : i32
    %c0_i32_0 = arith.constant 0 : i32
    %c0_i32_1 = arith.constant 0 : i32
    return %arg0, %c0_i32, %c0_i32_0 : i32, i32, i32
  }
  func.func @transform_1(%arg0: i32) -> (i32, i32) {
    %c0_i32 = arith.constant 0 : i32
    %c0_i32_0 = arith.constant 0 : i32
    %c0_i32_1 = arith.constant 0 : i32
    return %c0_i32, %c0_i32_0 : i32, i32
  }
  func.func @transform_2(%arg0: i32) -> (i32, i32) {
    %c0_i32 = arith.constant 0 : i32
    %c0_i32_0 = arith.constant 0 : i32
    %c0_i32_1 = arith.constant 0 : i32
    return %c0_i32, %c0_i32_0 : i32, i32
  }
  func.func @transform_3(%arg0: i32) -> (i32, i32, i32) {
    %c0_i32 = arith.constant 0 : i32
    %c0_i32_0 = arith.constant 0 : i32
    %c0_i32_1 = arith.constant 0 : i32
    return %arg0, %c0_i32, %c0_i32_0 : i32, i32, i32
  }
}

</mosaic_0001>

<llo_original>
// kernel: tpu_custom_call.1
$region0: #{tpu_custom_call.1}
  #allocation0 [shape = 'u32[]', space=smem, size = 0x4, offset = 0x4, fixed_abs, tag = 'smem constant byte address 0x4 - core index']
  #allocation1 [shape = 'u32[72,128]{1,0:T(1,128)}', space=vmem, size = 0x9000, scoped, tag = 'internal scratch']
  %s0 = inlined_call_operand.vmem [shape: f32[2,64,16], index: 0, kind: input, shape index: {}]
  %s1 = inlined_call_operand.vmem [shape: f32[64,4], index: 1, kind: input, shape index: {}]
  %s2 = inlined_call_operand.vmem [shape: f32[4,64], index: 2, kind: input, shape index: {}]
  %s3 = inlined_call_operand.vmem [shape: f32[2,64,16], index: 3, kind: output, shape index: {}]
  %s4 = sld [smem:[#allocation0]]
  $region22: #{tpu_custom_call.1} parent=0
    _
  %s6 = ssub.s32 1, %s4
  %s7 = scalar_select 0, %s6, %s4
  // Predicated region
  $region2: #{tpu_custom_call.1} parent=0 // pred_check
    _
  $region3: #{tpu_custom_call.1} parent=0 // pred_check_branch
    %9 = sbr.rel (0) target = $region5
  $region4: #{tpu_custom_call.1} parent=0 // pred_region
    _
  $region5: #{tpu_custom_call.1} parent=0 // pred_fallthru
    _
  // Predicated region
  $region6: #{tpu_custom_call.1} parent=0 // pred_check
    _
  $region7: #{tpu_custom_call.1} parent=0 // pred_check_branch
    %11 = sbr.rel (0) target = $region9
  $region8: #{tpu_custom_call.1} parent=0 // pred_region
    _
  $region9: #{tpu_custom_call.1} parent=0 // pred_fallthru
    _
  // Predicated region
  $region10: #{tpu_custom_call.1} parent=0 // pred_check
    _
  $region11: #{tpu_custom_call.1} parent=0 // pred_check_branch
    %13 = sbr.rel (0) target = $region13
  $region12: #{tpu_custom_call.1} parent=0 // pred_region
    _
  $region13: #{tpu_custom_call.1} parent=0 // pred_fallthru
    _
  %v14 = vld [vmem:[%s0] sm:$0xff]
  %v15 = vld [vmem:[%s0 + $0x8] sm:$0xff]
  %v16 = vld [vmem:[%s0 + $0x10] sm:$0xff]
  %v17 = vld [vmem:[%s0 + $0x18] sm:$0xff]
  %v18 = vld [vmem:[%s0 + $0x20] sm:$0xff]
  %v19 = vld [vmem:[%s0 + $0x28] sm:$0xff]
  %v20 = vld [vmem:[%s0 + $0x30] sm:$0xff]
  %v21 = vld [vmem:[%s0 + $0x38] sm:$0xff]
  %v22 = vld [vmem:[%s0 + $0x40] sm:$0xff]
  %v23 = vld [vmem:[%s0 + $0x48] sm:$0xff]
  %v24 = vld [vmem:[%s0 + $0x50] sm:$0xff]
  %v25 = vld [vmem:[%s0 + $0x58] sm:$0xff]
  %v26 = vld [vmem:[%s0 + $0x60] sm:$0xff]
  %v27 = vld [vmem:[%s0 + $0x68] sm:$0xff]
  %v28 = vld [vmem:[%s0 + $0x70] sm:$0xff]
  %v29 = vld [vmem:[%s0 + $0x78] sm:$0xff]
  %vm30 = vcmask 130048
  %v31 = vsel %vm30, %v14, 0.0
  %32 = vadd.xlane.f32.xlu0 %v31
  %v33 = vpop.xlane.xlu0 %32
  %v34 = vsel %vm30, %v15, 0.0
  %35 = vadd.xlane.f32.xlu0 %v34
  %v36 = vpop.xlane.xlu0 %35
  %v37 = vsel %vm30, %v16, 0.0
  %38 = vadd.xlane.f32.xlu0 %v37
  %v39 = vpop.xlane.xlu0 %38
  %v40 = vsel %vm30, %v17, 0.0
  %41 = vadd.xlane.f32.xlu0 %v40
  %v42 = vpop.xlane.xlu0 %41
  %v43 = vsel %vm30, %v18, 0.0
  %44 = vadd.xlane.f32.xlu0 %v43
  %v45 = vpop.xlane.xlu0 %44
  %v46 = vsel %vm30, %v19, 0.0
  %47 = vadd.xlane.f32.xlu0 %v46
  %v48 = vpop.xlane.xlu0 %47
  %v49 = vsel %vm30, %v20, 0.0
  %50 = vadd.xlane.f32.xlu0 %v49
  %v51 = vpop.xlane.xlu0 %50
  %v52 = vsel %vm30, %v21, 0.0
  %53 = vadd.xlane.f32.xlu0 %v52
  %v54 = vpop.xlane.xlu0 %53
  %v55 = vsel %vm30, %v22, 0.0
  %56 = vadd.xlane.f32.xlu0 %v55
  %v57 = vpop.xlane.xlu0 %56
  %v58 = vsel %vm30, %v23, 0.0
  %59 = vadd.xlane.f32.xlu0 %v58
  %v60 = vpop.xlane.xlu0 %59
  %v61 = vsel %vm30, %v24, 0.0
  %62 = vadd.xlane.f32.xlu0 %v61
  %v63 = vpop.xlane.xlu0 %62
  %v64 = vsel %vm30, %v25, 0.0
  %65 = vadd.xlane.f32.xlu0 %v64
  %v66 = vpop.xlane.xlu0 %65
  %v67 = vsel %vm30, %v26, 0.0
  %68 = vadd.xlane.f32.xlu0 %v67
  %v69 = vpop.xlane.xlu0 %68
  %v70 = vsel %vm30, %v27, 0.0
  %71 = vadd.xlane.f32.xlu0 %v70
  %v72 = vpop.xlane.xlu0 %71
  %v73 = vsel %vm30, %v28, 0.0
  %74 = vadd.xlane.f32.xlu0 %v73
  %v75 = vpop.xlane.xlu0 %74
  %v76 = vsel %vm30, %v29, 0.0
  %77 = vadd.xlane.f32.xlu0 %v76
  %v78 = vpop.xlane.xlu0 %77
  %v79 = vrcp.pop 16.0
  %v80 = vmul.f32 16.0, %v79
  %v81 = vsub.f32 1.0, %v80
  %v82 = vmul.f32 %v79, %v81
  %v83 = vadd.f32 %v79, %v82
  %vm84 = vweird.f32 %v79
  %v85 = vsel %vm84, %v79, %v83
  %v86 = vmul.f32 %v33, %v85
  %v87 = vmul.f32 %v36, %v85
  %v88 = vmul.f32 %v39, %v85
  %v89 = vmul.f32 %v42, %v85
  %v90 = vmul.f32 %v45, %v85
  %v91 = vmul.f32 %v48, %v85
  %v92 = vmul.f32 %v51, %v85
  %v93 = vmul.f32 %v54, %v85
  %v94 = vmul.f32 %v57, %v85
  %v95 = vmul.f32 %v60, %v85
  %v96 = vmul.f32 %v63, %v85
  %v97 = vmul.f32 %v66, %v85
  %v98 = vmul.f32 %v69, %v85
  %v99 = vmul.f32 %v72, %v85
  %v100 = vmul.f32 %v75, %v85
  %v101 = vmul.f32 %v78, %v85
  %v102 = vld [vmem:[%s1] sm:$0xff]
  %v103 = vld [vmem:[%s1 + $0x8] sm:$0xff]
  %v104 = vld [vmem:[%s1 + $0x10] sm:$0xff]
  %v105 = vld [vmem:[%s1 + $0x18] sm:$0xff]
  %v106 = vld [vmem:[%s1 + $0x20] sm:$0xff]
  %v107 = vld [vmem:[%s1 + $0x28] sm:$0xff]
  %v108 = vld [vmem:[%s1 + $0x30] sm:$0xff]
  %v109 = vld [vmem:[%s1 + $0x38] sm:$0xff]
  %v126 = vlaneseq
  %v127 = vand.u32 %v126, 127
  %v128 = vperm.slane %v86, %v127
  %v129 = vadd.s32 %v127, 4294967288
  %v130 = vperm.slane %v87, %v129
  %vm131 = vcmask 130112
  %v132 = vsel %vm131, %v130, %v128
  %v133 = vadd.s32 %v127, 4294967280
  %v134 = vperm.slane %v88, %v133
  %vm135 = vcmask 195712
  %v136 = vsel %vm135, %v134, %v132
  %v137 = vadd.s32 %v127, 4294967272
  %v138 = vperm.slane %v89, %v137
  %vm139 = vcmask 261312
  %v140 = vsel %vm139, %v138, %v136
  %v141 = vadd.s32 %v127, 4294967264
  %v142 = vperm.slane %v90, %v141
  %vm143 = vcmask 326912
  %v144 = vsel %vm143, %v142, %v140
  %v145 = vadd.s32 %v127, 4294967256
  %v146 = vperm.slane %v91, %v145
  %vm147 = vcmask 392512
  %v148 = vsel %vm147, %v146, %v144
  %v149 = vadd.s32 %v127, 4294967248
  %v150 = vperm.slane %v92, %v149
  %vm151 = vcmask 458112
  %v152 = vsel %vm151, %v150, %v148
  %v153 = vadd.s32 %v127, 4294967240
  %v154 = vperm.slane %v93, %v153
  %vm155 = vcmask 523712
  %v156 = vsel %vm155, %v154, %v152
  %v157 = vperm.slane %v94, %v127
  %v158 = vperm.slane %v95, %v129
  %v159 = vsel %vm131, %v158, %v157
  %v160 = vperm.slane %v96, %v133
  %v161 = vsel %vm135, %v160, %v159
  %v162 = vperm.slane %v97, %v137
  %v163 = vsel %vm139, %v162, %v161
  %v164 = vperm.slane %v98, %v141
  %v165 = vsel %vm143, %v164, %v163
  %v166 = vperm.slane %v99, %v145
  %v167 = vsel %vm147, %v166, %v165
  %v168 = vperm.slane %v100, %v149
  %v169 = vsel %vm151, %v168, %v167
  %v170 = vperm.slane %v101, %v153
  %v171 = vsel %vm155, %v170, %v169
  %vm172 = vcmask 1041409
  %v173 = vsel %vm172, %v171, %v156
  %vm174 = vcmask 523264
  %v175 = vsel %vm174, %v173, 0
  %177 = vmatpush.msra.mxu0 0.0
  %178 = vmatpush.msra.mxu0 0.0
  %179 = vmatpush.msra.mxu0 0.0
  %180 = vmatpush.msra.mxu0 0.0
  %181 = vmatpush.msra.mxu0 0.0
  %182 = vmatpush.msra.mxu0 0.0
  %183 = vmatpush.msra.mxu0 0.0
  %184 = vmatpush.msra.mxu0 0.0
  %185 = vmatpush.msra.mxu0 %v109
  %186 = vmatpush.msra.mxu0 %v108
  %187 = vmatpush.msra.mxu0 %v107
  %188 = vmatpush.msra.mxu0 %v106
  %189 = vmatpush.msra.mxu0 %v105
  %190 = vmatpush.msra.mxu0 %v104
  %191 = vmatpush.msra.mxu0 %v103
  %192 = vmatpush.msra.mxu0 %v102
  %193 = vmatmul.f32.gmra.mxu0 %v175
  %v194 = vpop.f32.mrf.mxu0
  %v195 = vadd.f32 0.0, %v194
  %196 = vdwg.mxu0
  %v197 = vmax.f32 %v195, 0.0
  %v198 = vld [vmem:[%s2] sm:$0xf]
  %vm199 = vcmask 31744
  %v201 = vsel %vm199, %v197, 0
  %vm203 = vcmask 1043456
  %v205 = vsel %vm203, %v198, 0
  %207 = vmatpush.msra.mxu0 0.0
  %208 = vmatpush.msra.mxu0 0.0
  %209 = vmatpush.msra.mxu0 0.0
  %210 = vmatpush.msra.mxu0 0.0
  %211 = vmatpush.msra.mxu0 0.0
  %212 = vmatpush.msra.mxu0 0.0
  %213 = vmatpush.msra.mxu0 0.0
  %214 = vmatpush.msra.mxu0 0.0
  %215 = vmatpush.msra.mxu0 0.0
  %216 = vmatpush.msra.mxu0 0.0
  %217 = vmatpush.msra.mxu0 0.0
  %218 = vmatpush.msra.mxu0 0.0
  %219 = vmatpush.msra.mxu0 0.0
  %220 = vmatpush.msra.mxu0 0.0
  %221 = vmatpush.msra.mxu0 0.0
  %222 = vmatpush.msra.mxu0 %v205
  %223 = vmatmul.f32.gmra.mxu0 %v201
  %v224 = vpop.f32.mrf.mxu0
  %v225 = vadd.f32 0.0, %v224
  %226 = vdwg.mxu0
  %v227 = vxor.u32 %v225, 2147483648
  %v228 = vmul.f32 %v227, 1.442695
  %v229 = vpow.pop %v228
  %v230 = vadd.f32 %v229, 1.0
  %v231 = vrcp.pop %v230
  %v232 = vmul.f32 %v230, %v231
  %v233 = vsub.f32 1.0, %v232
  %v234 = vmul.f32 %v231, %v233
  %v235 = vadd.f32 %v231, %v234
  %vm236 = vweird.f32 %v230
  %vm237 = vweird.f32 %v231
  %vm238 = vmor %vm236, %vm237
  %v239 = vsel %vm238, %v231, %v235
  %v240 = vand.u32 2147483647, %v230
  %vm241 = vcmp.eq.f32.partialorder %v240, 8.507059e+37
  %v242 = vand.u32 %v230, 2147483648
  %v243 = vor.u32 1.1754944e-38, %v242
  %v244 = vsel %vm241, %v243, %v239
  %v245 = vmul.f32 1.0, %v244
  %v246 = vperm.slane %v245, 0
  %v247 = vlaneseq
  %v248 = vshrl.u32 %v247, 7
  %250 = vset.pattern.permute.xlu0 %v248
  %251 = vperm.xlu0 %250, %v246
  %v252 = vpop.permute.xlu0 %251
  %v253 = vlaneseq
  %v254 = vshrl.u32 %v253, 7
  %v255 = vadd.s32 %v254, 8
  %256 = vset.pattern.permute.xlu0 %v255
  %257 = vperm.xlu0 %256, %v246
  %v258 = vpop.permute.xlu0 %257
  %v259 = vlaneseq
  %v260 = vshrl.u32 %v259, 7
  %v261 = vadd.s32 %v260, 16
  %262 = vset.pattern.permute.xlu0 %v261
  %263 = vperm.xlu0 %262, %v246
  %v264 = vpop.permute.xlu0 %263
  %v265 = vlaneseq
  %v266 = vshrl.u32 %v265, 7
  %v267 = vadd.s32 %v266, 24
  %268 = vset.pattern.permute.xlu0 %v267
  %269 = vperm.xlu0 %268, %v246
  %v270 = vpop.permute.xlu0 %269
  %v271 = vlaneseq
  %v272 = vshrl.u32 %v271, 7
  %v273 = vadd.s32 %v272, 32
  %274 = vset.pattern.permute.xlu0 %v273
  %275 = vperm.xlu0 %274, %v246
  %v276 = vpop.permute.xlu0 %275
  %v277 = vlaneseq
  %v278 = vshrl.u32 %v277, 7
  %v279 = vadd.s32 %v278, 40
  %280 = vset.pattern.permute.xlu0 %v279
  %281 = vperm.xlu0 %280, %v246
  %v282 = vpop.permute.xlu0 %281
  %v283 = vlaneseq
  %v284 = vshrl.u32 %v283, 7
  %v285 = vadd.s32 %v284, 48
  %286 = vset.pattern.permute.xlu0 %v285
  %287 = vperm.xlu0 %286, %v246
  %v288 = vpop.permute.xlu0 %287
  %v289 = vlaneseq
  %v290 = vshrl.u32 %v289, 7
  %v291 = vadd.s32 %v290, 56
  %292 = vset.pattern.permute.xlu0 %v291
  %293 = vperm.xlu0 %292, %v246
  %v294 = vpop.permute.xlu0 %293
  %v295 = vperm.slane %v245, 1
  %v296 = vlaneseq
  %v297 = vshrl.u32 %v296, 7
  %299 = vset.pattern.permute.xlu0 %v297
  %300 = vperm.xlu0 %299, %v295
  %v301 = vpop.permute.xlu0 %300
  %v302 = vlaneseq
  %v303 = vshrl.u32 %v302, 7
  %v304 = vadd.s32 %v303, 8
  %305 = vset.pattern.permute.xlu0 %v304
  %306 = vperm.xlu0 %305, %v295
  %v307 = vpop.permute.xlu0 %306
  %v308 = vlaneseq
  %v309 = vshrl.u32 %v308, 7
  %v310 = vadd.s32 %v309, 16
  %311 = vset.pattern.permute.xlu0 %v310
  %312 = vperm.xlu0 %311, %v295
  %v313 = vpop.permute.xlu0 %312
  %v314 = vlaneseq
  %v315 = vshrl.u32 %v314, 7
  %v316 = vadd.s32 %v315, 24
  %317 = vset.pattern.permute.xlu0 %v316
  %318 = vperm.xlu0 %317, %v295
  %v319 = vpop.permute.xlu0 %318
  %v320 = vlaneseq
  %v321 = vshrl.u32 %v320, 7
  %v322 = vadd.s32 %v321, 32
  %323 = vset.pattern.permute.xlu0 %v322
  %324 = vperm.xlu0 %323, %v295
  %v325 = vpop.permute.xlu0 %324
  %v326 = vlaneseq
  %v327 = vshrl.u32 %v326, 7
  %v328 = vadd.s32 %v327, 40
  %329 = vset.pattern.permute.xlu0 %v328
  %330 = vperm.xlu0 %329, %v295
  %v331 = vpop.permute.xlu0 %330
  %v332 = vlaneseq
  %v333 = vshrl.u32 %v332, 7
  %v334 = vadd.s32 %v333, 48
  %335 = vset.pattern.permute.xlu0 %v334
  %336 = vperm.xlu0 %335, %v295
  %v337 = vpop.permute.xlu0 %336
  %v338 = vlaneseq
  %v339 = vshrl.u32 %v338, 7
  %v340 = vadd.s32 %v339, 56
  %341 = vset.pattern.permute.xlu0 %v340
  %342 = vperm.xlu0 %341, %v295
  %v343 = vpop.permute.xlu0 %342
  %v344 = vmul.f32 %v14, %v252
  %v345 = vmul.f32 %v15, %v258
  %v346 = vmul.f32 %v16, %v264
  %v347 = vmul.f32 %v17, %v270
  %v348 = vmul.f32 %v18, %v276
  %v349 = vmul.f32 %v19, %v282
  %v350 = vmul.f32 %v20, %v288
  %v351 = vmul.f32 %v21, %v294
  %v352 = vmul.f32 %v22, %v301
  %v353 = vmul.f32 %v23, %v307
  %v354 = vmul.f32 %v24, %v313
  %v355 = vmul.f32 %v25, %v319
  %v356 = vmul.f32 %v26, %v325
  %v357 = vmul.f32 %v27, %v331
  %v358 = vmul.f32 %v28, %v337
  %v359 = vmul.f32 %v29, %v343
  %360 = vst.msk [vmem:[%s3] sm:$0xff] %vm30, %v344
  %361 = vst.msk [vmem:[%s3 + $0x8] sm:$0xff] %vm30, %v345
  %362 = vst.msk [vmem:[%s3 + $0x10] sm:$0xff] %vm30, %v346
  %363 = vst.msk [vmem:[%s3 + $0x18] sm:$0xff] %vm30, %v347
  %364 = vst.msk [vmem:[%s3 + $0x20] sm:$0xff] %vm30, %v348
  %365 = vst.msk [vmem:[%s3 + $0x28] sm:$0xff] %vm30, %v349
  %366 = vst.msk [vmem:[%s3 + $0x30] sm:$0xff] %vm30, %v350
  %367 = vst.msk [vmem:[%s3 + $0x38] sm:$0xff] %vm30, %v351
  %368 = vst.msk [vmem:[%s3 + $0x40] sm:$0xff] %vm30, %v352
  %369 = vst.msk [vmem:[%s3 + $0x48] sm:$0xff] %vm30, %v353
  %370 = vst.msk [vmem:[%s3 + $0x50] sm:$0xff] %vm30, %v354
  %371 = vst.msk [vmem:[%s3 + $0x58] sm:$0xff] %vm30, %v355
  %372 = vst.msk [vmem:[%s3 + $0x60] sm:$0xff] %vm30, %v356
  %373 = vst.msk [vmem:[%s3 + $0x68] sm:$0xff] %vm30, %v357
  %374 = vst.msk [vmem:[%s3 + $0x70] sm:$0xff] %vm30, %v358
  %375 = vst.msk [vmem:[%s3 + $0x78] sm:$0xff] %vm30, %v359
  // Predicated region
  $region14: #{tpu_custom_call.1} parent=0 // pred_check
    _
  $region15: #{tpu_custom_call.1} parent=0 // pred_check_branch
    %377 = sbr.rel (0) target = $region17
  $region16: #{tpu_custom_call.1} parent=0 // pred_region
    _
  $region17: #{tpu_custom_call.1} parent=0 // pred_fallthru
    _
  // Predicated region
  $region18: #{tpu_custom_call.1} parent=0 // pred_check
    _
  $region19: #{tpu_custom_call.1} parent=0 // pred_check_branch
    %379 = sbr.rel (0) target = $region21
  $region20: #{tpu_custom_call.1} parent=0 // pred_region
    _
  $region21: #{tpu_custom_call.1} parent=0 // pred_fallthru
    _

</llo_original>
